<compile_context>
chip_gen: v6e
topology: v6e:2x2x1
jax: 0.10.0
libtpu: 0.0.40
codegen_flags: <defaults>
</compile_context>

<pallas_src>
import jax
import jax.numpy as jnp
from jax import lax
from jax.experimental import pallas as pl
from jax.experimental.pallas import tpu as pltpu

EMBED_DIM = 32
FC_SIZE = 200
BN_EPS = 1e-5
NSEG = 128                       # lane-dense indicator width (18 real segments)

# (name, vocab_size, embed_width, kind);  kind: emb / bag (sum) / bagm (mean)
USER_FEATURES = [
    ("uid", 1000, EMBED_DIM, "emb"),
    ("gender", 3, EMBED_DIM // 2, "emb"),
    ("birthyear", 128, EMBED_DIM // 2, "emb"),
    ("constellation", 13, EMBED_DIM // 2, "emb"),
    ("character_tag", 100, EMBED_DIM, "bag"),
    ("user_tag", 100, EMBED_DIM, "bag"),
    ("theme_tag", 100, EMBED_DIM, "bag"),
]
PARTY_FEATURES = [
    ("pid", 1000, EMBED_DIM, "emb"),
    ("title", 50, EMBED_DIM, "emb"),
    ("activity_type", 10, EMBED_DIM // 2, "emb"),
    ("activity_theme_tag", 1000, EMBED_DIM, "bag"),
    ("people_max", 1000, EMBED_DIM // 2, "emb"),
    ("people_min", 1000, EMBED_DIM // 2, "emb"),
    ("sex_limit_type", 10, EMBED_DIM // 2, "bagm"),   # EmbeddingBag default mode='mean'
    ("longitude", 360, EMBED_DIM // 2, "bagm"),       # EmbeddingBag default mode='mean'
    ("latitude", 360, EMBED_DIM // 2, "emb"),
    ("pre_amt", 1000, EMBED_DIM // 2, "emb"),
    ("price_type", 10, EMBED_DIM // 2, "emb"),
]

N_USER = len(USER_FEATURES)              # 7
N_PARTY = len(PARTY_FEATURES)            # 11
U_WIDTH = N_USER * EMBED_DIM             # 224
P_WIDTH = N_PARTY * EMBED_DIM            # 352
U_PAD = 8 * EMBED_DIM                    # 256  (7 features + 1 zero pad group)
P_PAD = 12 * EMBED_DIM                   # 384  (11 features + 1 zero pad group)
FC_PAD = 256                             # FC_SIZE padded lane-dense
TB_MAX = 256                             # max batch rows per grid step


# --------------------------------- kernels ----------------------------------

def _make_feat_stats_kernel(batch, tile_b):
    """Phase 1: per-feature Linear + ReLU (per-side block-diag MXU matmuls),
    bf16 h writeback, and whole-batch BN statistics accumulated column-sum-first
    into a resident (2, W) output block."""

    def kernel(slab_u_ref, slab_p_ref, w_u_ref, b_u_ref, w_p_ref, b_p_ref,
               h_u_ref, h_p_ref, stats_u_ref, stats_p_ref):
        i = pl.program_id(0)

        @pl.when(i == 0)
        def _():
            stats_u_ref[...] = jnp.zeros_like(stats_u_ref)
            stats_p_ref[...] = jnp.zeros_like(stats_p_ref)

        # Mask rows beyond the real batch: relu(bias) of zero-padded slab rows
        # would otherwise pollute the batch statistics.
        row = i * tile_b + lax.broadcasted_iota(jnp.int32, (tile_b, 1), 0)
        valid = (row < batch).astype(jnp.float32)                 # (TB, 1)

        def side(slab_ref, w_ref, b_ref, h_ref, stats_ref):
            h = jnp.dot(slab_ref[...], w_ref[...],
                        preferred_element_type=jnp.float32)       # (TB, W)
            h = jnp.maximum(h + b_ref[...], 0.0) * valid
            h_ref[...] = h.astype(h_ref.dtype)
            # column-sum-first stats: two sublane reductions, f32 accumulation
            stats_ref[...] += jnp.concatenate(
                [jnp.sum(h, axis=0, keepdims=True),
                 jnp.sum(h * h, axis=0, keepdims=True)], axis=0)  # (2, W)

        side(slab_u_ref, w_u_ref, b_u_ref, h_u_ref, stats_u_ref)
        side(slab_p_ref, w_p_ref, b_p_ref, h_p_ref, stats_p_ref)

    return kernel


def _make_norm_combine_kernel(n_count):
    """Phase 2: finalize BN stats (fused M=2 indicator matmuls), normalize,
    per-side combine Linear + tanh, lane-dense (TB, 256) stores."""
    inv_n = 1.0 / float(n_count)

    def kernel(h_u_ref, h_p_ref, stats_u_ref, stats_p_ref,
               ind_u_ref, ind_ut_ref, ind_p_ref, ind_pt_ref,
               w_cu_ref, b_cu_ref, w_cp_ref, b_cp_ref,
               out_u_ref, out_p_ref):

        def normalize(h_ref, stats_ref, ind_ref, indt_ref):
            # (2, W) @ (W, 128): segment E[x] and E[x^2] in one M=2 push.
            seg = jnp.dot(stats_ref[...], ind_ref[...],
                          preferred_element_type=jnp.float32) * inv_n
            mean = seg[0:1, :]
            var = jnp.maximum(seg[1:2, :] - mean * mean, 0.0)      # clamp >= 0
            ms = jnp.concatenate([mean, lax.rsqrt(var + BN_EPS)], axis=0)
            # (2, 128) @ (128, W): broadcast mean / invstd back to columns.
            cols = jnp.dot(ms, indt_ref[...],
                           preferred_element_type=jnp.float32)     # (2, W)
            h = h_ref[...].astype(jnp.float32)
            return ((h - cols[0:1, :]) * cols[1:2, :]).astype(jnp.bfloat16)

        hu = normalize(h_u_ref, stats_u_ref, ind_u_ref, ind_ut_ref)
        hp = normalize(h_p_ref, stats_p_ref, ind_p_ref, ind_pt_ref)

        zu = jnp.dot(hu, w_cu_ref[...], preferred_element_type=jnp.float32)
        zp = jnp.dot(hp, w_cp_ref[...], preferred_element_type=jnp.float32)
        out_u_ref[...] = jnp.tanh(zu + b_cu_ref[...])
        out_p_ref[...] = jnp.tanh(zp + b_cp_ref[...])

    return kernel


# ----------------------------- parameter init -------------------------------

def _linear_params(key, d_in, d_out):
    k1, k2 = jax.random.split(key)
    bound = 1.0 / (d_in ** 0.5)
    w = jax.random.uniform(k1, (d_in, d_out), jnp.float32, -bound, bound)
    b = jax.random.uniform(k2, (d_out,), jnp.float32, -bound, bound)
    return w, b


def init_params(key):
    params = {"user": [], "party": []}
    for side, feats in (("user", USER_FEATURES), ("party", PARTY_FEATURES)):
        for name, vocab, d, kind in feats:
            key, k_emb, k_fc = jax.random.split(key, 3)
            table = jax.random.normal(k_emb, (vocab, d), jnp.float32)
            w, b = _linear_params(k_fc, d, EMBED_DIM)
            params[side].append(dict(name=name, kind=kind, table=table, w=w, b=b))
    key, k1, k2 = jax.random.split(key, 3)
    params["user_combine"] = _linear_params(k1, U_WIDTH, FC_SIZE)
    params["party_combine"] = _linear_params(k2, P_WIDTH, FC_SIZE)
    return params


def pack_params(params):
    """Build per-side block-diagonal weights, indicator matrices and pre-padded
    (width-32) embedding tables once."""

    def pack_side(plist, width):
        w = jnp.zeros((width, width), jnp.float32)
        b = jnp.zeros((width,), jnp.float32)
        ind = jnp.zeros((width, NSEG), jnp.float32)
        tables = []
        for f, p in enumerate(plist):
            d = p["w"].shape[0]
            off = f * EMBED_DIM
            w = w.at[off:off + d, off:off + EMBED_DIM].set(p["w"])
            b = b.at[off:off + EMBED_DIM].set(p["b"])
            ind = ind.at[off:off + EMBED_DIM, f].set(1.0)
            tables.append(jnp.pad(p["table"], ((0, 0), (0, EMBED_DIM - d))))
        return w.astype(jnp.bfloat16), b[None, :], ind, ind.T, tables

    w_u, b_u, ind_u, ind_ut, user_tables = pack_side(params["user"], U_PAD)
    w_p, b_p, ind_p, ind_pt, party_tables = pack_side(params["party"], P_PAD)

    uc_w, uc_b = params["user_combine"]    # (224, 200), (200,)
    pc_w, pc_b = params["party_combine"]   # (352, 200), (200,)
    w_cu = jnp.zeros((U_PAD, FC_PAD), jnp.float32).at[:U_WIDTH, :FC_SIZE].set(uc_w)
    w_cp = jnp.zeros((P_PAD, FC_PAD), jnp.float32).at[:P_WIDTH, :FC_SIZE].set(pc_w)
    b_cu = jnp.zeros((1, FC_PAD), jnp.float32).at[0, :FC_SIZE].set(uc_b)
    b_cp = jnp.zeros((1, FC_PAD), jnp.float32).at[0, :FC_SIZE].set(pc_b)

    return dict(
        w_u=w_u, b_u=b_u, w_p=w_p, b_p=b_p,                     # bf16 / f32
        ind_u=ind_u, ind_ut=ind_ut, ind_p=ind_p, ind_pt=ind_pt,  # f32 (tiny M<=2 dots)
        w_cu=w_cu.astype(jnp.bfloat16), b_cu=b_cu,
        w_cp=w_cp.astype(jnp.bfloat16), b_cp=b_cp,
        user_tables=user_tables, party_tables=party_tables,
    )


# ------------------------------- glue (JAX) ---------------------------------

def _embed_side(tables, feats, inputs, width):
    """Gather / EmbeddingBag on width-32 pre-padded tables; single concat."""
    cols = []
    for (name, _, _, kind), tab in zip(feats, tables):
        idx = inputs[name]
        e = tab[idx]                                # (B, 32) or (B, L, 32)
        if kind == "bag":
            e = e.sum(axis=1)
        elif kind == "bagm":
            e = e.mean(axis=1)
        cols.append(e)
    b = cols[0].shape[0]
    pad = width - len(cols) * EMBED_DIM
    if pad:
        cols.append(jnp.zeros((b, pad), cols[0].dtype))
    return jnp.concatenate(cols, axis=-1)


def _batch_tiling(batch):
    if batch <= TB_MAX:
        tb = max(16, ((batch + 15) // 16) * 16)     # bf16 sublane packing
        return tb, tb
    tb = TB_MAX
    return ((batch + tb - 1) // tb) * tb, tb


def rec_model_forward(params, packed, user_input, party_input):
    u = _embed_side(packed["user_tables"], USER_FEATURES, user_input, U_PAD)
    p = _embed_side(packed["party_tables"], PARTY_FEATURES, party_input, P_PAD)
    batch = u.shape[0]
    bp, tb = _batch_tiling(batch)
    nt = bp // tb
    slab_u = jnp.pad(u, ((0, bp - batch), (0, 0))).astype(jnp.bfloat16)
    slab_p = jnp.pad(p, ((0, bp - batch), (0, 0))).astype(jnp.bfloat16)

    def tiled(w):
        return pl.BlockSpec((tb, w), lambda i: (i, 0))

    def const(shape):
        nd = len(shape)
        return pl.BlockSpec(shape, lambda i: (0,) * nd)

    vmem = 32 * 1024 * 1024

    # Phase 1: feature Linears + ReLU + whole-batch BN stats ("arbitrary":
    # the stats output block is a resident accumulator across the B axis).
    h_u, h_p, stats_u, stats_p = pl.pallas_call(
        _make_feat_stats_kernel(batch, tb),
        grid=(nt,),
        in_specs=[tiled(U_PAD), tiled(P_PAD),
                  const((U_PAD, U_PAD)), const((1, U_PAD)),
                  const((P_PAD, P_PAD)), const((1, P_PAD))],
        out_specs=[tiled(U_PAD), tiled(P_PAD),
                   const((2, U_PAD)), const((2, P_PAD))],
        out_shape=[jax.ShapeDtypeStruct((bp, U_PAD), jnp.bfloat16),
                   jax.ShapeDtypeStruct((bp, P_PAD), jnp.bfloat16),
                   jax.ShapeDtypeStruct((2, U_PAD), jnp.float32),
                   jax.ShapeDtypeStruct((2, P_PAD), jnp.float32)],
        compiler_params=pltpu.CompilerParams(
            dimension_semantics=("arbitrary",), vmem_limit_bytes=vmem),
    )(slab_u, slab_p, packed["w_u"], packed["b_u"],
      packed["w_p"], packed["b_p"])

    # Phase 2: normalize + combine + tanh, independent per B tile ("parallel").
    out_u, out_p = pl.pallas_call(
        _make_norm_combine_kernel(batch * EMBED_DIM),
        grid=(nt,),
        in_specs=[tiled(U_PAD), tiled(P_PAD),
                  const((2, U_PAD)), const((2, P_PAD)),
                  const((U_PAD, NSEG)), const((NSEG, U_PAD)),
                  const((P_PAD, NSEG)), const((NSEG, P_PAD)),
                  const((U_PAD, FC_PAD)), const((1, FC_PAD)),
                  const((P_PAD, FC_PAD)), const((1, FC_PAD))],
        out_specs=[tiled(FC_PAD), tiled(FC_PAD)],
        out_shape=[jax.ShapeDtypeStruct((bp, FC_PAD), jnp.float32),
                   jax.ShapeDtypeStruct((bp, FC_PAD), jnp.float32)],
        compiler_params=pltpu.CompilerParams(
            dimension_semantics=("parallel",), vmem_limit_bytes=vmem),
    )(h_u, h_p, stats_u, stats_p,
      packed["ind_u"], packed["ind_ut"], packed["ind_p"], packed["ind_pt"],
      packed["w_cu"], packed["b_cu"], packed["w_cp"], packed["b_cp"])

    fu = out_u[:batch, :FC_SIZE]                       # (B, 200)
    fp = out_p[:batch, :FC_SIZE]                       # (B, 200)
    score = jnp.sum(fu * fp, axis=-1, keepdims=True)   # cheap, done in XLA
    # match PyTorch shapes: output (B,1), feature_user/party (B,1,200)
    return score, fu[:, None, :], fp[:, None, :]


# --------------------------- pure-JAX reference -----------------------------

def rec_model_reference(params, user_input, party_input):
    def side(feat_params, inputs, comb):
        cols = []
        for p in feat_params:
            idx = inputs[p["name"]]
            e = p["table"][idx]
            if p["kind"] == "bag":
                e = e.sum(axis=1)
            elif p["kind"] == "bagm":
                e = e.mean(axis=1)
            h = jnp.maximum(e @ p["w"] + p["b"], 0.0)
            mean = jnp.mean(h)
            var = jnp.mean((h - mean) ** 2)
            cols.append((h - mean) * lax.rsqrt(var + BN_EPS))
        cat = jnp.concatenate(cols, axis=-1)
        w, b = comb
        return jnp.tanh(cat @ w + b)

    fu = side(params["user"], user_input, params["user_combine"])
    fp = side(params["party"], party_input, params["party_combine"])
    return jnp.sum(fu * fp, axis=-1, keepdims=True), fu, fp


# ----------------------------------- main -----------------------------------

if __name__ == "__main__":
    B, L = 8, 4  # batch, bag length

    params = init_params(jax.random.PRNGKey(0))
    packed = pack_params(params)

    def make_inputs(feats, key):
        out = {}
        for name, vocab, d, kind in feats:
            key, k = jax.random.split(key)
            shape = (B, L) if kind in ("bag", "bagm") else (B,)
            out[name] = jax.random.randint(k, shape, 0, vocab)
        return out, key

    key_in = jax.random.PRNGKey(1)
    user_input, key_in = make_inputs(USER_FEATURES, key_in)
    party_input, key_in = make_inputs(PARTY_FEATURES, key_in)

    out, feat_user, feat_party = rec_model_forward(params, packed,
                                                   user_input, party_input)
    jax.block_until_ready((out, feat_user, feat_party))

    ref_out, ref_fu, ref_fp = rec_model_reference(params, user_input, party_input)

    assert out.shape == (B, 1)
    assert feat_user.shape == (B, 1, FC_SIZE)
    assert feat_party.shape == (B, 1, FC_SIZE)

    def rel_err(a, b):
        return float(jnp.linalg.norm(a - b) / (jnp.linalg.norm(b) + 1e-8))

    # bf16 MXU operands / bf16 intermediate h (f32 accumulation & BN stats)
    # -> relaxed tolerances vs the f32 reference.
    assert rel_err(feat_user[:, 0, :], ref_fu) < 5e-2, "feature_user mismatch"
    assert rel_err(feat_party[:, 0, :], ref_fp) < 5e-2, "feature_party mismatch"
    assert bool(jnp.allclose(out, ref_out, rtol=5e-2, atol=2e-1)), "score mismatch"

    print("KERNEL_OK")
</pallas_src>

<mosaic_0001>
module attributes {stable_mosaic.version = 11 : i64} {
  func.func @kernel(%arg0: i32, %arg1: memref<16x256xbf16, #tpu.memory_space<vmem>>, %arg2: memref<16x384xbf16, #tpu.memory_space<vmem>>, %arg3: memref<256x256xbf16, #tpu.memory_space<vmem>>, %arg4: memref<1x256xf32, #tpu.memory_space<vmem>>, %arg5: memref<384x384xbf16, #tpu.memory_space<vmem>>, %arg6: memref<1x384xf32, #tpu.memory_space<vmem>>, %arg7: memref<16x256xbf16, #tpu.memory_space<vmem>>, %arg8: memref<16x384xbf16, #tpu.memory_space<vmem>>, %arg9: memref<2x256xf32, #tpu.memory_space<vmem>>, %arg10: memref<2x384xf32, #tpu.memory_space<vmem>>) attributes {dimension_semantics = [#tpu.dimension_semantics<arbitrary>], iteration_bounds = array<i64: 1>, scalar_prefetch = 0 : i64, scratch_operands = 0 : i64, tpu.core_type = #tpu.core_type<tc>, window_params = [{transform_indices = @transform_0, window_bounds = array<i64: 16, 256>}, {transform_indices = @transform_1, window_bounds = array<i64: 16, 384>}, {pipeline_mode = #tpu.pipeline_mode<synchronous>, transform_indices = @transform_2, window_bounds = array<i64: 256, 256>}, {pipeline_mode = #tpu.pipeline_mode<synchronous>, transform_indices = @transform_3, window_bounds = array<i64: 1, 256>}, {pipeline_mode = #tpu.pipeline_mode<synchronous>, transform_indices = @transform_4, window_bounds = array<i64: 384, 384>}, {pipeline_mode = #tpu.pipeline_mode<synchronous>, transform_indices = @transform_5, window_bounds = array<i64: 1, 384>}, {transform_indices = @transform_6, window_bounds = array<i64: 16, 256>}, {transform_indices = @transform_7, window_bounds = array<i64: 16, 384>}, {pipeline_mode = #tpu.pipeline_mode<synchronous>, transform_indices = @transform_8, window_bounds = array<i64: 2, 256>}, {pipeline_mode = #tpu.pipeline_mode<synchronous>, transform_indices = @transform_9, window_bounds = array<i64: 2, 384>}]} {
    %c0_i32 = arith.constant 0 : i32
    %0 = arith.cmpi eq, %arg0, %c0_i32 : i32
    %1 = arith.extui %0 : i1 to i32
    %c0_i32_0 = arith.constant 0 : i32
    %2 = arith.cmpi ne, %1, %c0_i32_0 : i32
    scf.if %2 {
      %cst_31 = arith.constant 0.000000e+00 : f32
      %53 = vector.broadcast %cst_31 : f32 to vector<2x256xf32>
      %c0_32 = arith.constant 0 : index
      %c0_33 = arith.constant 0 : index
      %54 = vector.load %arg9[%c0_32, %c0_33] : memref<2x256xf32, #tpu.memory_space<vmem>>, vector<2x256xf32>
      tpu.vector_store %arg9[%c0_32, %c0_33], %53 {strides = array<i32>} : memref<2x256xf32, #tpu.memory_space<vmem>>, vector<2x256xf32>,
      %cst_34 = arith.constant 0.000000e+00 : f32
      %55 = vector.broadcast %cst_34 : f32 to vector<2x384xf32>
      %c0_35 = arith.constant 0 : index
      %c0_36 = arith.constant 0 : index
      %56 = vector.load %arg10[%c0_35, %c0_36] : memref<2x384xf32, #tpu.memory_space<vmem>>, vector<2x384xf32>
      tpu.vector_store %arg10[%c0_35, %c0_36], %55 {strides = array<i32>} : memref<2x384xf32, #tpu.memory_space<vmem>>, vector<2x384xf32>,
    } else {
    }
    %c16_i32 = arith.constant 16 : i32
    %3 = arith.muli %arg0, %c16_i32 : i32
    %4 = tpu.iota {dimensions = array<i32: 0>} : vector<16x1xi32>
    %5 = vector.broadcast %3 : i32 to vector<16x1xi32>
    %6 = arith.addi %5, %4 : vector<16x1xi32>
    %c8_i32 = arith.constant 8 : i32
    %7 = vector.broadcast %c8_i32 : i32 to vector<16x1xi32>
    %8 = arith.cmpi slt, %6, %7 : vector<16x1xi32>
    %9 = arith.extui %8 : vector<16x1xi1> to vector<16x1xi32>
    %10 = arith.sitofp %9 : vector<16x1xi32> to vector<16x1xf32>
    %c0 = arith.constant 0 : index
    %c0_1 = arith.constant 0 : index
    %11 = vector.load %arg1[%c0, %c0_1] : memref<16x256xbf16, #tpu.memory_space<vmem>>, vector<16x256xbf16>
    %c0_2 = arith.constant 0 : index
    %c0_3 = arith.constant 0 : index
    %12 = vector.load %arg3[%c0_2, %c0_3] : memref<256x256xbf16, #tpu.memory_space<vmem>>, vector<256x256xbf16>
    %cst = arith.constant dense<0.000000e+00> : vector<16x256xf32>
    %13 = tpu.matmul %11, %12, %cst {dimension_numbers = #tpu.dot_dimension_numbers<[1], [0], [0], [1], [0, 0, 1, 1], [], []>} : vector<16x256xbf16>, vector<256x256xbf16>, vector<16x256xf32> -> vector<16x256xf32>
    %c0_4 = arith.constant 0 : index
    %c0_5 = arith.constant 0 : index
    %14 = vector.load %arg4[%c0_4, %c0_5] : memref<1x256xf32, #tpu.memory_space<vmem>>, vector<1x256xf32>
    %15 = vector.broadcast %14 : vector<1x256xf32> to vector<16x256xf32>
    %16 = arith.addf %13, %15 : vector<16x256xf32>
    %cst_6 = arith.constant 0.000000e+00 : f32
    %17 = vector.broadcast %cst_6 : f32 to vector<16x256xf32>
    %18 = arith.maximumf %16, %17 : vector<16x256xf32>
    %19 = vector.broadcast %10 : vector<16x1xf32> to vector<16x256xf32>
    %20 = arith.mulf %18, %19 : vector<16x256xf32>
    %21 = arith.truncf %20 : vector<16x256xf32> to vector<16x256xbf16>
    %c0_7 = arith.constant 0 : index
    %c0_8 = arith.constant 0 : index
    %22 = vector.load %arg7[%c0_7, %c0_8] : memref<16x256xbf16, #tpu.memory_space<vmem>>, vector<16x256xbf16>
    tpu.vector_store %arg7[%c0_7, %c0_8], %21 {strides = array<i32>} : memref<16x256xbf16, #tpu.memory_space<vmem>>, vector<16x256xbf16>,
    %c0_9 = arith.constant 0 : index
    %c0_10 = arith.constant 0 : index
    %23 = vector.load %arg9[%c0_9, %c0_10] : memref<2x256xf32, #tpu.memory_space<vmem>>, vector<2x256xf32>
    %cst_11 = arith.constant dense<0.000000e+00> : vector<256xf32>
    %24 = vector.multi_reduction <add>, %20, %cst_11 [0] : vector<16x256xf32> to vector<256xf32>
    %25 = vector.shape_cast %24 : vector<256xf32> to vector<1x256xf32>
    %26 = arith.mulf %20, %20 : vector<16x256xf32>
    %cst_12 = arith.constant dense<0.000000e+00> : vector<256xf32>
    %27 = vector.multi_reduction <add>, %26, %cst_12 [0] : vector<16x256xf32> to vector<256xf32>
    %28 = vector.shape_cast %27 : vector<256xf32> to vector<1x256xf32>
    %29 = tpu.concatenate %25, %28 in 0 : vector<1x256xf32>, vector<1x256xf32> -> vector<2x256xf32>
    %30 = arith.addf %23, %29 : vector<2x256xf32>
    %c0_13 = arith.constant 0 : index
    %c0_14 = arith.constant 0 : index
    %31 = vector.load %arg9[%c0_13, %c0_14] : memref<2x256xf32, #tpu.memory_space<vmem>>, vector<2x256xf32>
    tpu.vector_store %arg9[%c0_13, %c0_14], %30 {strides = array<i32>} : memref<2x256xf32, #tpu.memory_space<vmem>>, vector<2x256xf32>,
    %c0_15 = arith.constant 0 : index
    %c0_16 = arith.constant 0 : index
    %32 = vector.load %arg2[%c0_15, %c0_16] : memref<16x384xbf16, #tpu.memory_space<vmem>>, vector<16x384xbf16>
    %c0_17 = arith.constant 0 : index
    %c0_18 = arith.constant 0 : index
    %33 = vector.load %arg5[%c0_17, %c0_18] : memref<384x384xbf16, #tpu.memory_space<vmem>>, vector<384x384xbf16>
    %cst_19 = arith.constant dense<0.000000e+00> : vector<16x384xf32>
    %34 = tpu.matmul %32, %33, %cst_19 {dimension_numbers = #tpu.dot_dimension_numbers<[1], [0], [0], [1], [0, 0, 1, 1], [], []>} : vector<16x384xbf16>, vector<384x384xbf16>, vector<16x384xf32> -> vector<16x384xf32>
    %c0_20 = arith.constant 0 : index
    %c0_21 = arith.constant 0 : index
    %35 = vector.load %arg6[%c0_20, %c0_21] : memref<1x384xf32, #tpu.memory_space<vmem>>, vector<1x384xf32>
    %36 = vector.broadcast %35 : vector<1x384xf32> to vector<16x384xf32>
    %37 = arith.addf %34, %36 : vector<16x384xf32>
    %cst_22 = arith.constant 0.000000e+00 : f32
    %38 = vector.broadcast %cst_22 : f32 to vector<16x384xf32>
    %39 = arith.maximumf %37, %38 : vector<16x384xf32>
    %40 = vector.broadcast %10 : vector<16x1xf32> to vector<16x384xf32>
    %41 = arith.mulf %39, %40 : vector<16x384xf32>
    %42 = arith.truncf %41 : vector<16x384xf32> to vector<16x384xbf16>
    %c0_23 = arith.constant 0 : index
    %c0_24 = arith.constant 0 : index
    %43 = vector.load %arg8[%c0_23, %c0_24] : memref<16x384xbf16, #tpu.memory_space<vmem>>, vector<16x384xbf16>
    tpu.vector_store %arg8[%c0_23, %c0_24], %42 {strides = array<i32>} : memref<16x384xbf16, #tpu.memory_space<vmem>>, vector<16x384xbf16>,
    %c0_25 = arith.constant 0 : index
    %c0_26 = arith.constant 0 : index
    %44 = vector.load %arg10[%c0_25, %c0_26] : memref<2x384xf32, #tpu.memory_space<vmem>>, vector<2x384xf32>
    %cst_27 = arith.constant dense<0.000000e+00> : vector<384xf32>
    %45 = vector.multi_reduction <add>, %41, %cst_27 [0] : vector<16x384xf32> to vector<384xf32>
    %46 = vector.shape_cast %45 : vector<384xf32> to vector<1x384xf32>
    %47 = arith.mulf %41, %41 : vector<16x384xf32>
    %cst_28 = arith.constant dense<0.000000e+00> : vector<384xf32>
    %48 = vector.multi_reduction <add>, %47, %cst_28 [0] : vector<16x384xf32> to vector<384xf32>
    %49 = vector.shape_cast %48 : vector<384xf32> to vector<1x384xf32>
    %50 = tpu.concatenate %46, %49 in 0 : vector<1x384xf32>, vector<1x384xf32> -> vector<2x384xf32>
    %51 = arith.addf %44, %50 : vector<2x384xf32>
    %c0_29 = arith.constant 0 : index
    %c0_30 = arith.constant 0 : index
    %52 = vector.load %arg10[%c0_29, %c0_30] : memref<2x384xf32, #tpu.memory_space<vmem>>, vector<2x384xf32>
    tpu.vector_store %arg10[%c0_29, %c0_30], %51 {strides = array<i32>} : memref<2x384xf32, #tpu.memory_space<vmem>>, vector<2x384xf32>,
    return
  }
  func.func @transform_0(%arg0: i32) -> (i32, i32) {
    %c0_i32 = arith.constant 0 : i32
    %c0_i32_0 = arith.constant 0 : i32
    return %arg0, %c0_i32 : i32, i32
  }
  func.func @transform_1(%arg0: i32) -> (i32, i32) {
    %c0_i32 = arith.constant 0 : i32
    %c0_i32_0 = arith.constant 0 : i32
    return %arg0, %c0_i32 : i32, i32
  }
  func.func @transform_2(%arg0: i32) -> (i32, i32) {
    %c0_i32 = arith.constant 0 : i32
    %c0_i32_0 = arith.constant 0 : i32
    %c0_i32_1 = arith.constant 0 : i32
    return %c0_i32, %c0_i32_0 : i32, i32
  }
  func.func @transform_3(%arg0: i32) -> (i32, i32) {
    %c0_i32 = arith.constant 0 : i32
    %c0_i32_0 = arith.constant 0 : i32
    %c0_i32_1 = arith.constant 0 : i32
    return %c0_i32, %c0_i32_0 : i32, i32
  }
  func.func @transform_4(%arg0: i32) -> (i32, i32) {
    %c0_i32 = arith.constant 0 : i32
    %c0_i32_0 = arith.constant 0 : i32
    %c0_i32_1 = arith.constant 0 : i32
    return %c0_i32, %c0_i32_0 : i32, i32
  }
  func.func @transform_5(%arg0: i32) -> (i32, i32) {
    %c0_i32 = arith.constant 0 : i32
    %c0_i32_0 = arith.constant 0 : i32
    %c0_i32_1 = arith.constant 0 : i32
    return %c0_i32, %c0_i32_0 : i32, i32
  }
  func.func @transform_6(%arg0: i32) -> (i32, i32) {
    %c0_i32 = arith.constant 0 : i32
    %c0_i32_0 = arith.constant 0 : i32
    return %arg0, %c0_i32 : i32, i32
  }
  func.func @transform_7(%arg0: i32) -> (i32, i32) {
    %c0_i32 = arith.constant 0 : i32
    %c0_i32_0 = arith.constant 0 : i32
    return %arg0, %c0_i32 : i32, i32
  }
  func.func @transform_8(%arg0: i32) -> (i32, i32) {
    %c0_i32 = arith.constant 0 : i32
    %c0_i32_0 = arith.constant 0 : i32
    %c0_i32_1 = arith.constant 0 : i32
    return %c0_i32, %c0_i32_0 : i32, i32
  }
  func.func @transform_9(%arg0: i32) -> (i32, i32) {
    %c0_i32 = arith.constant 0 : i32
    %c0_i32_0 = arith.constant 0 : i32
    %c0_i32_1 = arith.constant 0 : i32
    return %c0_i32, %c0_i32_0 : i32, i32
  }
}

</mosaic_0001>

<llo_original>
// kernel: tpu_custom_call.1
$region0: #{tpu_custom_call.1}
  #allocation0 [shape = 'u32[]', space=smem, size = 0x4, offset = 0x4, fixed_abs, tag = 'smem constant byte address 0x4 - core index']
  #allocation1 [shape = 'u32[144,128]{1,0:T(1,128)}', space=vmem, size = 0x12000, scoped, tag = 'internal scratch']
  %s0 = inlined_call_operand.hbm [shape: bf16[16,256], index: 0, kind: input, shape index: {}]
  %s1 = inlined_call_operand.hbm [shape: bf16[16,384], index: 1, kind: input, shape index: {}]
  %s2 = inlined_call_operand.hbm [shape: bf16[256,256], index: 2, kind: input, shape index: {}]
  %s3 = inlined_call_operand.vmem [shape: f32[1,256], index: 3, kind: input, shape index: {}]
  %s4 = inlined_call_operand.hbm [shape: bf16[384,384], index: 4, kind: input, shape index: {}]
  %s5 = inlined_call_operand.vmem [shape: f32[1,384], index: 5, kind: input, shape index: {}]
  %s6 = inlined_call_operand.hbm [shape: bf16[16,256], index: 6, kind: output, shape index: {0}]
  %s7 = inlined_call_operand.hbm [shape: bf16[16,384], index: 7, kind: output, shape index: {1}]
  %s8 = inlined_call_operand.hbm [shape: f32[2,256], index: 8, kind: output, shape index: {2}]
  %s9 = inlined_call_operand.hbm [shape: f32[2,384], index: 9, kind: output, shape index: {3}]
  %10 = xla_tuple %s6, %s7, %s8, %s9
  %s11 = sld [smem:[#allocation0]]
  $region78: #{tpu_custom_call.1} parent=0
    _
  %s13 = ssub.s32 1, %s11
  %s14 = scalar_select 0, %s13, %s11
  $region1: #{tpu_custom_call.1} parent=0
    #allocation2 [shape = 'u8[8192]{0}', space=vmem, size = 0x2000, scoped, tag = 'input window, operand 0, single buffered']
    #allocation3 [shape = 's32[1]{0}', space=sflag, size = 0x4, scoped, tag = 'scoped memory for tpu_custom_call.1']
    #allocation4 [shape = 's32[1]{0}', space=sflag, size = 0x4, scoped, tag = 'scoped memory for tpu_custom_call.1']
    #allocation5 [shape = 'u8[12288]{0}', space=vmem, size = 0x3000, scoped, tag = 'input window, operand 1, single buffered']
    #allocation6 [shape = 's32[1]{0}', space=sflag, size = 0x4, scoped, tag = 'scoped memory for tpu_custom_call.1']
    #allocation7 [shape = 'u8[131072]{0}', space=vmem, size = 0x20000, scoped, tag = 'input window, operand 2, single buffered']
    #allocation8 [shape = 'u8[294912]{0}', space=vmem, size = 0x48000, scoped, tag = 'input window, operand 4, single buffered']
    #allocation9 [shape = 's32[1]{0}', space=sflag, size = 0x4, scoped, tag = 'scoped memory for tpu_custom_call.1']
    #allocation10 [shape = 'u8[8192]{0}', space=vmem, size = 0x2000, scoped, tag = 'output window, operand 0, single buffered']
    #allocation11 [shape = 'u8[12288]{0}', space=vmem, size = 0x3000, scoped, tag = 'output window, operand 1, single buffered']
    #allocation12 [shape = 's32[1]{0}', space=sflag, size = 0x4, scoped, tag = 'scoped memory for tpu_custom_call.1']
    #allocation13 [shape = 'u8[2048]{0}', space=vmem, size = 0x800, scoped, tag = 'output window, operand 2, single buffered']
    #allocation14 [shape = 'u8[3072]{0}', space=vmem, size = 0xc00, scoped, tag = 'output window, operand 3, single buffered']
    #allocation15 [shape = 's32[1]{0}', space=sflag, size = 0x4, scoped, tag = 'scoped memory for tpu_custom_call.1']
    %15 = vsyncpa [#allocation3], 0
    %16 = vsyncpa [#allocation6], 0
    %17 = vsyncpa [#allocation9], 0
    %18 = vsyncpa [#allocation4], 0
    %19 = vsyncpa [#allocation12], 0
    %20 = vsyncpa [#allocation15], 0
    // Predicated region
    $region2: #{tpu_custom_call.1} parent=1 // pred_check
      _
    $region3: #{tpu_custom_call.1} parent=1 // pred_check_branch
      %22 = sbr.rel (0) target = $region5
    $region4: #{tpu_custom_call.1} parent=1 // pred_region
      %s24 = ssub.s32 256, 256
      %25 = vsyncadd [#allocation3], %s24
      %s26 = sshll.u32 [#allocation2], 4
      %s27 = int_to_ptr.vmem [resolvable:$true] %s26
      %32 = dma.hbm_to_vmem [thread:$0]  %s0, 256, %s27, [#allocation3], 128, 128, 8
    $region5: #{tpu_custom_call.1} parent=1 // pred_fallthru
      _
    // Predicated region
    $region6: #{tpu_custom_call.1} parent=1 // pred_check
      _
    $region7: #{tpu_custom_call.1} parent=1 // pred_check_branch
      %34 = sbr.rel (0) target = $region9
    $region8: #{tpu_custom_call.1} parent=1 // pred_region
      %s36 = ssub.s32 384, 384
      %37 = vsyncadd [#allocation6], %s36
      %s38 = sshll.u32 [#allocation5], 4
      %s39 = int_to_ptr.vmem [resolvable:$true] %s38
      %44 = dma.hbm_to_vmem [thread:$0]  %s1, 384, %s39, [#allocation6], 192, 192, 12
    $region9: #{tpu_custom_call.1} parent=1 // pred_fallthru
      _
    // Predicated region
    $region10: #{tpu_custom_call.1} parent=1 // pred_check
      _
    $region11: #{tpu_custom_call.1} parent=1 // pred_check_branch
      %46 = sbr.rel (0) target = $region13
    $region12: #{tpu_custom_call.1} parent=1 // pred_region
      %s48 = ssub.s32 4096, 4096
      %49 = vsyncadd [#allocation6], %s48
      %s50 = sshll.u32 [#allocation7], 4
      %s51 = int_to_ptr.vmem [resolvable:$true] %s50
      %56 = dma.hbm_to_vmem [thread:$0]  %s2, 4096, %s51, [#allocation6], 128, 128, 8
    $region13: #{tpu_custom_call.1} parent=1 // pred_fallthru
      _
    // Predicated region
    $region14: #{tpu_custom_call.1} parent=1 // pred_check
      _
    $region15: #{tpu_custom_call.1} parent=1 // pred_check_branch
      %58 = sbr.rel (0) target = $region17
    $region16: #{tpu_custom_call.1} parent=1 // pred_region
      _
    $region17: #{tpu_custom_call.1} parent=1 // pred_fallthru
      _
    // Predicated region
    $region18: #{tpu_custom_call.1} parent=1 // pred_check
      _
    $region19: #{tpu_custom_call.1} parent=1 // pred_check_branch
      %60 = sbr.rel (0) target = $region21
    $region20: #{tpu_custom_call.1} parent=1 // pred_region
      %s62 = ssub.s32 9216, 9216
      %63 = vsyncadd [#allocation9], %s62
      %s64 = sshll.u32 [#allocation8], 4
      %s65 = int_to_ptr.vmem [resolvable:$true] %s64
      %70 = dma.hbm_to_vmem [thread:$0]  %s4, 9216, %s65, [#allocation9], 192, 192, 12
    $region21: #{tpu_custom_call.1} parent=1 // pred_fallthru
      _
    // Predicated region
    $region22: #{tpu_custom_call.1} parent=1 // pred_check
      _
    $region23: #{tpu_custom_call.1} parent=1 // pred_check_branch
      %72 = sbr.rel (0) target = $region25
    $region24: #{tpu_custom_call.1} parent=1 // pred_region
      _
    $region25: #{tpu_custom_call.1} parent=1 // pred_fallthru
      _
    // Predicated region
    $region26: #{tpu_custom_call.1} parent=1 // pred_check
      _
    $region27: #{tpu_custom_call.1} parent=1 // pred_check_branch
      %74 = sbr.rel (0) target = $region29
    $region28: #{tpu_custom_call.1} parent=1 // pred_region
      %75 = dma.done [#allocation3], 256
    $region29: #{tpu_custom_call.1} parent=1 // pred_fallthru
      _
    // Predicated region
    $region30: #{tpu_custom_call.1} parent=1 // pred_check
      _
    $region31: #{tpu_custom_call.1} parent=1 // pred_check_branch
      %77 = sbr.rel (0) target = $region33
    $region32: #{tpu_custom_call.1} parent=1 // pred_region
      %78 = dma.done [#allocation6], 384
    $region33: #{tpu_custom_call.1} parent=1 // pred_fallthru
      _
    // Predicated region
    $region34: #{tpu_custom_call.1} parent=1 // pred_check
      _
    $region35: #{tpu_custom_call.1} parent=1 // pred_check_branch
      %80 = sbr.rel (0) target = $region37
    $region36: #{tpu_custom_call.1} parent=1 // pred_region
      %81 = dma.done [#allocation6], 4096
    $region37: #{tpu_custom_call.1} parent=1 // pred_fallthru
      _
    // Predicated region
    $region38: #{tpu_custom_call.1} parent=1 // pred_check
      _
    $region39: #{tpu_custom_call.1} parent=1 // pred_check_branch
      %83 = sbr.rel (0) target = $region41
    $region40: #{tpu_custom_call.1} parent=1 // pred_region
      %84 = dma.done [#allocation9], 9216
    $region41: #{tpu_custom_call.1} parent=1 // pred_fallthru
      _
    %p86 = scmp.eq.s32.totalorder 0, 0
    // Predicated region
    $region42: #{tpu_custom_call.1} parent=1 // pred_check
      %p87 = pneg %p86
    $region43: #{tpu_custom_call.1} parent=1 // pred_check_branch
      %89 = sbr.rel (%p87) target = $region45
    $region44: #{tpu_custom_call.1} parent=1 // pred_region
      %90 = vst [vmem:[#allocation13] sm:$0xf] 0.0
      %91 = vst [vmem:[#allocation14] sm:$0x3f] 0.0
    $region45: #{tpu_custom_call.1} parent=1 // pred_fallthru
      _
    %s92 = smul.u32 0, 16
    %v93 = vlaneseq
    %v94 = vshrl.u32 %v93, 7
    %v95 = vadd.s32 %v94, 8
    %v96 = vstv %s92
    %v97 = vadd.s32 %v96, %v94
    %v98 = vadd.s32 %v96, %v95
    %vm99 = vcmp.lt.s32.totalorder %v97, 8
    %vm100 = vcmp.lt.s32.totalorder %v98, 8
    %v101 = vsel %vm99, 1, 0
    %v102 = vsel %vm100, 1, 0
    %v103 = vcvt.s32.f32 %v101
    %v104 = vcvt.s32.f32 %v102
    %v105 = vld [vmem:[#allocation2] sm:$0xff]
    %v106 = vld [vmem:[#allocation2 + $0x8] sm:$0xff]
    %v107 = vld [vmem:[#allocation7] sm:$0xff]
    %v108 = vld [vmem:[#allocation7 + $0x8] sm:$0xff]
    %v109 = vld [vmem:[#allocation7 + $0x10] sm:$0xff]
    %v110 = vld [vmem:[#allocation7 + $0x18] sm:$0xff]
    %v111 = vld [vmem:[#allocation7 + $0x20] sm:$0xff]
    %v112 = vld [vmem:[#allocation7 + $0x28] sm:$0xff]
    %v113 = vld [vmem:[#allocation7 + $0x30] sm:$0xff]
    %v114 = vld [vmem:[#allocation7 + $0x38] sm:$0xff]
    %v115 = vld [vmem:[#allocation7 + $0x40] sm:$0xff]
    %v116 = vld [vmem:[#allocation7 + $0x48] sm:$0xff]
    %v117 = vld [vmem:[#allocation7 + $0x50] sm:$0xff]
    %v118 = vld [vmem:[#allocation7 + $0x58] sm:$0xff]
    %v119 = vld [vmem:[#allocation7 + $0x60] sm:$0xff]
    %v120 = vld [vmem:[#allocation7 + $0x68] sm:$0xff]
    %v121 = vld [vmem:[#allocation7 + $0x70] sm:$0xff]
    %v122 = vld [vmem:[#allocation7 + $0x78] sm:$0xff]
    %v123 = vld [vmem:[#allocation7 + $0x80] sm:$0xff]
    %v124 = vld [vmem:[#allocation7 + $0x88] sm:$0xff]
    %v125 = vld [vmem:[#allocation7 + $0x90] sm:$0xff]
    %v126 = vld [vmem:[#allocation7 + $0x98] sm:$0xff]
    %v127 = vld [vmem:[#allocation7 + $0xa0] sm:$0xff]
    %v128 = vld [vmem:[#allocation7 + $0xa8] sm:$0xff]
    %v129 = vld [vmem:[#allocation7 + $0xb0] sm:$0xff]
    %v130 = vld [vmem:[#allocation7 + $0xb8] sm:$0xff]
    %v131 = vld [vmem:[#allocation7 + $0xc0] sm:$0xff]
    %v132 = vld [vmem:[#allocation7 + $0xc8] sm:$0xff]
    %v133 = vld [vmem:[#allocation7 + $0xd0] sm:$0xff]
    %v134 = vld [vmem:[#allocation7 + $0xd8] sm:$0xff]
    %v135 = vld [vmem:[#allocation7 + $0xe0] sm:$0xff]
    %v136 = vld [vmem:[#allocation7 + $0xe8] sm:$0xff]
    %v137 = vld [vmem:[#allocation7 + $0xf0] sm:$0xff]
    %v138 = vld [vmem:[#allocation7 + $0xf8] sm:$0xff]
    %v139 = vld [vmem:[%s3] sm:$0x3]
    %v141 = vlaneseq
    %v142 = vshrl.u32 %v141, 7
    %v143 = vsub.s32 0, %v142
    %v144 = vrot.slane %v139, %v143
    %v145 = vlaneseq
    %v146 = vshrl.u32 %v145, 7
    %v147 = vsub.s32 1, %v146
    %v148 = vrot.slane %v139, %v147
    %v153 = vunpack.c.l.b16 %v105
    %v154 = vunpack.c.h.b16 %v105
    %v155 = vunpack.c.l.b16 %v106
    %v156 = vunpack.c.h.b16 %v106
    %v157 = vpack.c.b16 %v155, %v153
    %v158 = vpack.c.b16 %v156, %v154
    %v193 = vunpack.c.l.b16 %v107
    %v194 = vunpack.c.h.b16 %v107
    %v195 = vunpack.c.l.b16 %v108
    %v196 = vunpack.c.h.b16 %v108
    %v197 = vunpack.c.l.b16 %v109
    %v198 = vunpack.c.h.b16 %v109
    %v199 = vunpack.c.l.b16 %v110
    %v200 = vunpack.c.h.b16 %v110
    %v201 = vunpack.c.l.b16 %v111
    %v202 = vunpack.c.h.b16 %v111
    %v203 = vunpack.c.l.b16 %v112
    %v204 = vunpack.c.h.b16 %v112
    %v205 = vunpack.c.l.b16 %v113
    %v206 = vunpack.c.h.b16 %v113
    %v207 = vunpack.c.l.b16 %v114
    %v208 = vunpack.c.h.b16 %v114
    %v209 = vunpack.c.l.b16 %v115
    %v210 = vunpack.c.h.b16 %v115
    %v211 = vunpack.c.l.b16 %v116
    %v212 = vunpack.c.h.b16 %v116
    %v213 = vunpack.c.l.b16 %v117
    %v214 = vunpack.c.h.b16 %v117
    %v215 = vunpack.c.l.b16 %v118
    %v216 = vunpack.c.h.b16 %v118
    %v217 = vunpack.c.l.b16 %v119
    %v218 = vunpack.c.h.b16 %v119
    %v219 = vunpack.c.l.b16 %v120
    %v220 = vunpack.c.h.b16 %v120
    %v221 = vunpack.c.l.b16 %v121
    %v222 = vunpack.c.h.b16 %v121
    %v223 = vunpack.c.l.b16 %v122
    %v224 = vunpack.c.h.b16 %v122
    %v225 = vunpack.c.l.b16 %v123
    %v226 = vunpack.c.h.b16 %v123
    %v227 = vunpack.c.l.b16 %v124
    %v228 = vunpack.c.h.b16 %v124
    %v229 = vunpack.c.l.b16 %v125
    %v230 = vunpack.c.h.b16 %v125
    %v231 = vunpack.c.l.b16 %v126
    %v232 = vunpack.c.h.b16 %v126
    %v233 = vunpack.c.l.b16 %v127
    %v234 = vunpack.c.h.b16 %v127
    %v235 = vunpack.c.l.b16 %v128
    %v236 = vunpack.c.h.b16 %v128
    %v237 = vunpack.c.l.b16 %v129
    %v238 = vunpack.c.h.b16 %v129
    %v239 = vunpack.c.l.b16 %v130
    %v240 = vunpack.c.h.b16 %v130
    %v241 = vunpack.c.l.b16 %v131
    %v242 = vunpack.c.h.b16 %v131
    %v243 = vunpack.c.l.b16 %v132
    %v244 = vunpack.c.h.b16 %v132
    %v245 = vunpack.c.l.b16 %v133
    %v246 = vunpack.c.h.b16 %v133
    %v247 = vunpack.c.l.b16 %v134
    %v248 = vunpack.c.h.b16 %v134
    %v249 = vunpack.c.l.b16 %v135
    %v250 = vunpack.c.h.b16 %v135
    %v251 = vunpack.c.l.b16 %v136
    %v252 = vunpack.c.h.b16 %v136
    %v253 = vunpack.c.l.b16 %v137
    %v254 = vunpack.c.h.b16 %v137
    %v255 = vunpack.c.l.b16 %v138
    %v256 = vunpack.c.h.b16 %v138
    %v257 = vpack.c.b16 %v195, %v193
    %v258 = vpack.c.b16 %v196, %v194
    %v259 = vpack.c.b16 %v199, %v197
    %v260 = vpack.c.b16 %v200, %v198
    %v261 = vpack.c.b16 %v203, %v201
    %v262 = vpack.c.b16 %v204, %v202
    %v263 = vpack.c.b16 %v207, %v205
    %v264 = vpack.c.b16 %v208, %v206
    %v265 = vpack.c.b16 %v211, %v209
    %v266 = vpack.c.b16 %v212, %v210
    %v267 = vpack.c.b16 %v215, %v213
    %v268 = vpack.c.b16 %v216, %v214
    %v269 = vpack.c.b16 %v219, %v217
    %v270 = vpack.c.b16 %v220, %v218
    %v271 = vpack.c.b16 %v223, %v221
    %v272 = vpack.c.b16 %v224, %v222
    %v273 = vpack.c.b16 %v227, %v225
    %v274 = vpack.c.b16 %v228, %v226
    %v275 = vpack.c.b16 %v231, %v229
    %v276 = vpack.c.b16 %v232, %v230
    %v277 = vpack.c.b16 %v235, %v233
    %v278 = vpack.c.b16 %v236, %v234
    %v279 = vpack.c.b16 %v239, %v237
    %v280 = vpack.c.b16 %v240, %v238
    %v281 = vpack.c.b16 %v243, %v241
    %v282 = vpack.c.b16 %v244, %v242
    %v283 = vpack.c.b16 %v247, %v245
    %v284 = vpack.c.b16 %v248, %v246
    %v285 = vpack.c.b16 %v251, %v249
    %v286 = vpack.c.b16 %v252, %v250
    %v287 = vpack.c.b16 %v255, %v253
    %v288 = vpack.c.b16 %v256, %v254
    %321 = vmatprep.subr.bf16.mxu0 %v272
    %322 = vmatpush1.bf16.msra.mxu0 %v271
    %323 = vmatprep.subr.bf16.mxu0 %v270
    %324 = vmatpush1.bf16.msra.mxu0 %v269
    %325 = vmatprep.subr.bf16.mxu0 %v268
    %326 = vmatpush1.bf16.msra.mxu0 %v267
    %327 = vmatprep.subr.bf16.mxu0 %v266
    %328 = vmatpush1.bf16.msra.mxu0 %v265
    %329 = vmatprep.subr.bf16.mxu0 %v264
    %330 = vmatpush1.bf16.msra.mxu0 %v263
    %331 = vmatprep.subr.bf16.mxu0 %v262
    %332 = vmatpush1.bf16.msra.mxu0 %v261
    %333 = vmatprep.subr.bf16.mxu0 %v260
    %334 = vmatpush1.bf16.msra.mxu0 %v259
    %335 = vmatprep.subr.bf16.mxu0 %v258
    %336 = vmatpush1.bf16.msra.mxu0 %v257
    %337 = vmatprep.subr.bf16.mxu0 %v288
    %338 = vmatpush2.bf16.msra.mxu0 %v287
    %339 = vmatprep.subr.bf16.mxu0 %v286
    %340 = vmatpush2.bf16.msra.mxu0 %v285
    %341 = vmatprep.subr.bf16.mxu0 %v284
    %342 = vmatpush2.bf16.msra.mxu0 %v283
    %343 = vmatprep.subr.bf16.mxu0 %v282
    %344 = vmatpush2.bf16.msra.mxu0 %v281
    %345 = vmatprep.subr.bf16.mxu0 %v280
    %346 = vmatpush2.bf16.msra.mxu0 %v279
    %347 = vmatprep.subr.bf16.mxu0 %v278
    %348 = vmatpush2.bf16.msra.mxu0 %v277
    %349 = vmatprep.subr.bf16.mxu0 %v276
    %350 = vmatpush2.bf16.msra.mxu0 %v275
    %351 = vmatprep.subr.bf16.mxu0 %v274
    %352 = vmatpush2.bf16.msra.mxu0 %v273
    %353 = vmatprep.mubr.bf16.mxu0 %v158
    %354 = vmatmul.mubr.bf16.gmra.mxu0 %v157
    %v355 = vpop.f32.mrf.mxu0
    %v356 = vadd.f32 %v144, %v355
    %v357 = vpop.f32.mrf.mxu0
    %v358 = vadd.f32 %v148, %v357
    %v359 = vpop.f32.mrf.mxu0
    %v360 = vadd.f32 %v144, %v359
    %v361 = vpop.f32.mrf.mxu0
    %v362 = vadd.f32 %v148, %v361
    %363 = vdwg.mxu0
    %v364 = vmax.f32 %v356, 0.0
    %v365 = vmax.f32 %v358, 0.0
    %v366 = vmax.f32 %v360, 0.0
    %v367 = vmax.f32 %v362, 0.0
    %v368 = vmul.f32 %v364, %v103
    %v369 = vmul.f32 %v365, %v103
    %v370 = vmul.f32 %v366, %v104
    %v371 = vmul.f32 %v367, %v104
    %v372 = vpack.c.bf16 %v370, %v368
    %v373 = vpack.c.bf16 %v371, %v369
    %v376 = vunpack.c.l.b16 %v372
    %v377 = vunpack.c.l.b16 %v373
    %v378 = vunpack.c.h.b16 %v372
    %v379 = vunpack.c.h.b16 %v373
    %v380 = vpack.c.b16 %v377, %v376
    %v381 = vpack.c.b16 %v379, %v378
    %384 = vst [vmem:[#allocation10] sm:$0xff] %v380
    %385 = vst [vmem:[#allocation10 + $0x8] sm:$0xff] %v381
    %v386 = vld [vmem:[#allocation13] sm:$0xf]
    %v387 = vadd.f32 %v368, %v370
    %v388 = vrot.slane %v387, 4
    %v389 = vadd.f32 %v387, %v388
    %v390 = vrot.slane %v389, 2
    %v391 = vadd.f32 %v389, %v390
    %v392 = vrot.slane %v391, 1
    %v393 = vadd.f32 %v391, %v392
    %v394 = vadd.f32 %v369, %v371
    %v395 = vrot.slane %v394, 4
    %v396 = vadd.f32 %v394, %v395
    %v397 = vrot.slane %v396, 2
    %v398 = vadd.f32 %v396, %v397
    %v399 = vrot.slane %v398, 1
    %v400 = vadd.f32 %v398, %v399
    %v401 = vmul.f32 %v368, %v368
    %v402 = vmul.f32 %v369, %v369
    %v403 = vmul.f32 %v370, %v370
    %v404 = vmul.f32 %v371, %v371
    %v405 = vadd.f32 %v401, %v403
    %v406 = vrot.slane %v405, 4
    %v407 = vadd.f32 %v405, %v406
    %v408 = vrot.slane %v407, 2
    %v409 = vadd.f32 %v407, %v408
    %v410 = vrot.slane %v409, 1
    %v411 = vadd.f32 %v409, %v410
    %v412 = vadd.f32 %v402, %v404
    %v413 = vrot.slane %v412, 4
    %v414 = vadd.f32 %v412, %v413
    %v415 = vrot.slane %v414, 2
    %v416 = vadd.f32 %v414, %v415
    %v417 = vrot.slane %v416, 1
    %v418 = vadd.f32 %v416, %v417
    %vm419 = vcmask 1040384
    %v420 = vsel %vm419, %v393, %v411
    %v421 = vsel %vm419, %v400, %v418
    %v424 = vcombine.low %v420, %v421
    %v426 = vunpack.c.l.s4 1983009808
    %v427 = vunpack.c.0.s8 %v426
    %v428 = vlaneseq
    %v429 = vshrl.u32 %v428, 7
    %v430 = vsub.s32 %v427, %v429
    %v431 = vrot.slane %v424, %v430
    %v433 = vadd.f32 %v386, %v431
    %434 = vst [vmem:[#allocation13] sm:$0xf] %v433
    %v435 = vld [vmem:[#allocation5] sm:$0xff]
    %v436 = vld [vmem:[#allocation5 + $0x8] sm:$0xf]
    %v437 = vld [vmem:[#allocation5 + $0xc] sm:$0xff]
    %v438 = vld [vmem:[#allocation5 + $0x14] sm:$0xf]
    %v439 = vld [vmem:[#allocation8] sm:$0xff]
    %v440 = vld [vmem:[#allocation8 + $0x8] sm:$0xf]
    %v441 = vld [vmem:[#allocation8 + $0xc] sm:$0xff]
    %v442 = vld [vmem:[#allocation8 + $0x14] sm:$0xf]
    %v443 = vld [vmem:[#allocation8 + $0x18] sm:$0xff]
    %v444 = vld [vmem:[#allocation8 + $0x20] sm:$0xf]
    %v445 = vld [vmem:[#allocation8 + $0x24] sm:$0xff]
    %v446 = vld [vmem:[#allocation8 + $0x2c] sm:$0xf]
    %v447 = vld [vmem:[#allocation8 + $0x30] sm:$0xff]
    %v448 = vld [vmem:[#allocation8 + $0x38] sm:$0xf]
    %v449 = vld [vmem:[#allocation8 + $0x3c] sm:$0xff]
    %v450 = vld [vmem:[#allocation8 + $0x44] sm:$0xf]
    %v451 = vld [vmem:[#allocation8 + $0x48] sm:$0xff]
    %v452 = vld [vmem:[#allocation8 + $0x50] sm:$0xf]
    %v453 = vld [vmem:[#allocation8 + $0x54] sm:$0xff]
    %v454 = vld [vmem:[#allocation8 + $0x5c] sm:$0xf]
    %v455 = vld [vmem:[#allocation8 + $0x60] sm:$0xff]
    %v456 = vld [vmem:[#allocation8 + $0x68] sm:$0xf]
    %v457 = vld [vmem:[#allocation8 + $0x6c] sm:$0xff]
    %v458 = vld [vmem:[#allocation8 + $0x74] sm:$0xf]
    %v459 = vld [vmem:[#allocation8 + $0x78] sm:$0xff]
    %v460 = vld [vmem:[#allocation8 + $0x80] sm:$0xf]
    %v461 = vld [vmem:[#allocation8 + $0x84] sm:$0xff]
    %v462 = vld [vmem:[#allocation8 + $0x8c] sm:$0xf]
    %v463 = vld [vmem:[#allocation8 + $0x90] sm:$0xff]
    %v464 = vld [vmem:[#allocation8 + $0x98] sm:$0xf]
    %v465 = vld [vmem:[#allocation8 + $0x9c] sm:$0xff]
    %v466 = vld [vmem:[#allocation8 + $0xa4] sm:$0xf]
    %v467 = vld [vmem:[#allocation8 + $0xa8] sm:$0xff]
    %v468 = vld [vmem:[#allocation8 + $0xb0] sm:$0xf]
    %v469 = vld [vmem:[#allocation8 + $0xb4] sm:$0xff]
    %v470 = vld [vmem:[#allocation8 + $0xbc] sm:$0xf]
    %v471 = vld [vmem:[#allocation8 + $0xc0] sm:$0xff]
    %v472 = vld [vmem:[#allocation8 + $0xc8] sm:$0xf]
    %v473 = vld [vmem:[#allocation8 + $0xcc] sm:$0xff]
    %v474 = vld [vmem:[#allocation8 + $0xd4] sm:$0xf]
    %v475 = vld [vmem:[#allocation8 + $0xd8] sm:$0xff]
    %v476 = vld [vmem:[#allocation8 + $0xe0] sm:$0xf]
    %v477 = vld [vmem:[#allocation8 + $0xe4] sm:$0xff]
    %v478 = vld [vmem:[#allocation8 + $0xec] sm:$0xf]
    %v479 = vld [vmem:[#allocation8 + $0xf0] sm:$0xff]
    %v480 = vld [vmem:[#allocation8 + $0xf8] sm:$0xf]
    %v481 = vld [vmem:[#allocation8 + $0xfc] sm:$0xff]
    %v482 = vld [vmem:[#allocation8 + $0x104] sm:$0xf]
    %v483 = vld [vmem:[#allocation8 + $0x108] sm:$0xff]
    %v484 = vld [vmem:[#allocation8 + $0x110] sm:$0xf]
    %v485 = vld [vmem:[#allocation8 + $0x114] sm:$0xff]
    %v486 = vld [vmem:[#allocation8 + $0x11c] sm:$0xf]
    %v487 = vld [vmem:[#allocation8 + $0x120] sm:$0xff]
    %v488 = vld [vmem:[#allocation8 + $0x128] sm:$0xf]
    %v489 = vld [vmem:[#allocation8 + $0x12c] sm:$0xff]
    %v490 = vld [vmem:[#allocation8 + $0x134] sm:$0xf]
    %v491 = vld [vmem:[#allocation8 + $0x138] sm:$0xff]
    %v492 = vld [vmem:[#allocation8 + $0x140] sm:$0xf]
    %v493 = vld [vmem:[#allocation8 + $0x144] sm:$0xff]
    %v494 = vld [vmem:[#allocation8 + $0x14c] sm:$0xf]
    %v495 = vld [vmem:[#allocation8 + $0x150] sm:$0xff]
    %v496 = vld [vmem:[#allocation8 + $0x158] sm:$0xf]
    %v497 = vld [vmem:[#allocation8 + $0x15c] sm:$0xff]
    %v498 = vld [vmem:[#allocation8 + $0x164] sm:$0xf]
    %v499 = vld [vmem:[#allocation8 + $0x168] sm:$0xff]
    %v500 = vld [vmem:[#allocation8 + $0x170] sm:$0xf]
    %v501 = vld [vmem:[#allocation8 + $0x174] sm:$0xff]
    %v502 = vld [vmem:[#allocation8 + $0x17c] sm:$0xf]
    %v503 = vld [vmem:[#allocation8 + $0x180] sm:$0xff]
    %v504 = vld [vmem:[#allocation8 + $0x188] sm:$0xf]
    %v505 = vld [vmem:[#allocation8 + $0x18c] sm:$0xff]
    %v506 = vld [vmem:[#allocation8 + $0x194] sm:$0xf]
    %v507 = vld [vmem:[#allocation8 + $0x198] sm:$0xff]
    %v508 = vld [vmem:[#allocation8 + $0x1a0] sm:$0xf]
    %v509 = vld [vmem:[#allocation8 + $0x1a4] sm:$0xff]
    %v510 = vld [vmem:[#allocation8 + $0x1ac] sm:$0xf]
    %v511 = vld [vmem:[#allocation8 + $0x1b0] sm:$0xff]
    %v512 = vld [vmem:[#allocation8 + $0x1b8] sm:$0xf]
    %v513 = vld [vmem:[#allocation8 + $0x1bc] sm:$0xff]
    %v514 = vld [vmem:[#allocation8 + $0x1c4] sm:$0xf]
    %v515 = vld [vmem:[#allocation8 + $0x1c8] sm:$0xff]
    %v516 = vld [vmem:[#allocation8 + $0x1d0] sm:$0xf]
    %v517 = vld [vmem:[#allocation8 + $0x1d4] sm:$0xff]
    %v518 = vld [vmem:[#allocation8 + $0x1dc] sm:$0xf]
    %v519 = vld [vmem:[#allocation8 + $0x1e0] sm:$0xff]
    %v520 = vld [vmem:[#allocation8 + $0x1e8] sm:$0xf]
    %v521 = vld [vmem:[#allocation8 + $0x1ec] sm:$0xff]
    %v522 = vld [vmem:[#allocation8 + $0x1f4] sm:$0xf]
    %v523 = vld [vmem:[#allocation8 + $0x1f8] sm:$0xff]
    %v524 = vld [vmem:[#allocation8 + $0x200] sm:$0xf]
    %v525 = vld [vmem:[#allocation8 + $0x204] sm:$0xff]
    %v526 = vld [vmem:[#allocation8 + $0x20c] sm:$0xf]
    %v527 = vld [vmem:[#allocation8 + $0x210] sm:$0xff]
    %v528 = vld [vmem:[#allocation8 + $0x218] sm:$0xf]
    %v529 = vld [vmem:[#allocation8 + $0x21c] sm:$0xff]
    %v530 = vld [vmem:[#allocation8 + $0x224] sm:$0xf]
    %v531 = vld [vmem:[#allocation8 + $0x228] sm:$0xff]
    %v532 = vld [vmem:[#allocation8 + $0x230] sm:$0xf]
    %v533 = vld [vmem:[#allocation8 + $0x234] sm:$0xff]
    %v534 = vld [vmem:[#allocation8 + $0x23c] sm:$0xf]
    %v535 = vld [vmem:[%s5] sm:$0x7]
    %v537 = vlaneseq
    %v538 = vshrl.u32 %v537, 7
    %v539 = vsub.s32 0, %v538
    %v540 = vrot.slane %v535, %v539
    %v541 = vlaneseq
    %v542 = vshrl.u32 %v541, 7
    %v543 = vsub.s32 1, %v542
    %v544 = vrot.slane %v535, %v543
    %v545 = vlaneseq
    %v546 = vshrl.u32 %v545, 7
    %v547 = vsub.s32 2, %v546
    %v548 = vrot.slane %v535, %v547
    %v556 = vunpack.c.l.b16 %v435
    %v557 = vunpack.c.h.b16 %v435
    %v558 = vunpack.c.l.b16 %v436
    %v559 = vunpack.c.l.b16 %v437
    %v560 = vunpack.c.h.b16 %v437
    %v561 = vunpack.c.l.b16 %v438
    %v562 = vpack.c.b16 %v559, %v556
    %v563 = vpack.c.b16 %v560, %v557
    %v564 = vpack.c.b16 %v561, %v558
    %v664 = vunpack.c.l.b16 %v439
    %v665 = vunpack.c.h.b16 %v439
    %v666 = vunpack.c.l.b16 %v440
    %v667 = vunpack.c.l.b16 %v441
    %v668 = vunpack.c.h.b16 %v441
    %v669 = vunpack.c.l.b16 %v442
    %v670 = vunpack.c.l.b16 %v443
    %v671 = vunpack.c.h.b16 %v443
    %v672 = vunpack.c.l.b16 %v444
    %v673 = vunpack.c.l.b16 %v445
    %v674 = vunpack.c.h.b16 %v445
    %v675 = vunpack.c.l.b16 %v446
    %v676 = vunpack.c.l.b16 %v447
    %v677 = vunpack.c.h.b16 %v447
    %v678 = vunpack.c.l.b16 %v448
    %v679 = vunpack.c.l.b16 %v449
    %v680 = vunpack.c.h.b16 %v449
    %v681 = vunpack.c.l.b16 %v450
    %v682 = vunpack.c.l.b16 %v451
    %v683 = vunpack.c.h.b16 %v451
    %v684 = vunpack.c.l.b16 %v452
    %v685 = vunpack.c.l.b16 %v453
    %v686 = vunpack.c.h.b16 %v453
    %v687 = vunpack.c.l.b16 %v454
    %v688 = vunpack.c.l.b16 %v455
    %v689 = vunpack.c.h.b16 %v455
    %v690 = vunpack.c.l.b16 %v456
    %v691 = vunpack.c.l.b16 %v457
    %v692 = vunpack.c.h.b16 %v457
    %v693 = vunpack.c.l.b16 %v458
    %v694 = vunpack.c.l.b16 %v459
    %v695 = vunpack.c.h.b16 %v459
    %v696 = vunpack.c.l.b16 %v460
    %v697 = vunpack.c.l.b16 %v461
    %v698 = vunpack.c.h.b16 %v461
    %v699 = vunpack.c.l.b16 %v462
    %v700 = vunpack.c.l.b16 %v463
    %v701 = vunpack.c.h.b16 %v463
    %v702 = vunpack.c.l.b16 %v464
    %v703 = vunpack.c.l.b16 %v465
    %v704 = vunpack.c.h.b16 %v465
    %v705 = vunpack.c.l.b16 %v466
    %v706 = vunpack.c.l.b16 %v467
    %v707 = vunpack.c.h.b16 %v467
    %v708 = vunpack.c.l.b16 %v468
    %v709 = vunpack.c.l.b16 %v469
    %v710 = vunpack.c.h.b16 %v469
    %v711 = vunpack.c.l.b16 %v470
    %v712 = vunpack.c.l.b16 %v471
    %v713 = vunpack.c.h.b16 %v471
    %v714 = vunpack.c.l.b16 %v472
    %v715 = vunpack.c.l.b16 %v473
    %v716 = vunpack.c.h.b16 %v473
    %v717 = vunpack.c.l.b16 %v474
    %v718 = vunpack.c.l.b16 %v475
    %v719 = vunpack.c.h.b16 %v475
    %v720 = vunpack.c.l.b16 %v476
    %v721 = vunpack.c.l.b16 %v477
    %v722 = vunpack.c.h.b16 %v477
    %v723 = vunpack.c.l.b16 %v478
    %v724 = vunpack.c.l.b16 %v479
    %v725 = vunpack.c.h.b16 %v479
    %v726 = vunpack.c.l.b16 %v480
    %v727 = vunpack.c.l.b16 %v481
    %v728 = vunpack.c.h.b16 %v481
    %v729 = vunpack.c.l.b16 %v482
    %v730 = vunpack.c.l.b16 %v483
    %v731 = vunpack.c.h.b16 %v483
    %v732 = vunpack.c.l.b16 %v484
    %v733 = vunpack.c.l.b16 %v485
    %v734 = vunpack.c.h.b16 %v485
    %v735 = vunpack.c.l.b16 %v486
    %v736 = vunpack.c.l.b16 %v487
    %v737 = vunpack.c.h.b16 %v487
    %v738 = vunpack.c.l.b16 %v488
    %v739 = vunpack.c.l.b16 %v489
    %v740 = vunpack.c.h.b16 %v489
    %v741 = vunpack.c.l.b16 %v490
    %v742 = vunpack.c.l.b16 %v491
    %v743 = vunpack.c.h.b16 %v491
    %v744 = vunpack.c.l.b16 %v492
    %v745 = vunpack.c.l.b16 %v493
    %v746 = vunpack.c.h.b16 %v493
    %v747 = vunpack.c.l.b16 %v494
    %v748 = vunpack.c.l.b16 %v495
    %v749 = vunpack.c.h.b16 %v495
    %v750 = vunpack.c.l.b16 %v496
    %v751 = vunpack.c.l.b16 %v497
    %v752 = vunpack.c.h.b16 %v497
    %v753 = vunpack.c.l.b16 %v498
    %v754 = vunpack.c.l.b16 %v499
    %v755 = vunpack.c.h.b16 %v499
    %v756 = vunpack.c.l.b16 %v500
    %v757 = vunpack.c.l.b16 %v501
    %v758 = vunpack.c.h.b16 %v501
    %v759 = vunpack.c.l.b16 %v502
    %v760 = vunpack.c.l.b16 %v503
    %v761 = vunpack.c.h.b16 %v503
    %v762 = vunpack.c.l.b16 %v504
    %v763 = vunpack.c.l.b16 %v505
    %v764 = vunpack.c.h.b16 %v505
    %v765 = vunpack.c.l.b16 %v506
    %v766 = vunpack.c.l.b16 %v507
    %v767 = vunpack.c.h.b16 %v507
    %v768 = vunpack.c.l.b16 %v508
    %v769 = vunpack.c.l.b16 %v509
    %v770 = vunpack.c.h.b16 %v509
    %v771 = vunpack.c.l.b16 %v510
    %v772 = vunpack.c.l.b16 %v511
    %v773 = vunpack.c.h.b16 %v511
    %v774 = vunpack.c.l.b16 %v512
    %v775 = vunpack.c.l.b16 %v513
    %v776 = vunpack.c.h.b16 %v513
    %v777 = vunpack.c.l.b16 %v514
    %v778 = vunpack.c.l.b16 %v515
    %v779 = vunpack.c.h.b16 %v515
    %v780 = vunpack.c.l.b16 %v516
    %v781 = vunpack.c.l.b16 %v517
    %v782 = vunpack.c.h.b16 %v517
    %v783 = vunpack.c.l.b16 %v518
    %v784 = vunpack.c.l.b16 %v519
    %v785 = vunpack.c.h.b16 %v519
    %v786 = vunpack.c.l.b16 %v520
    %v787 = vunpack.c.l.b16 %v521
    %v788 = vunpack.c.h.b16 %v521
    %v789 = vunpack.c.l.b16 %v522
    %v790 = vunpack.c.l.b16 %v523
    %v791 = vunpack.c.h.b16 %v523
    %v792 = vunpack.c.l.b16 %v524
    %v793 = vunpack.c.l.b16 %v525
    %v794 = vunpack.c.h.b16 %v525
    %v795 = vunpack.c.l.b16 %v526
    %v796 = vunpack.c.l.b16 %v527
    %v797 = vunpack.c.h.b16 %v527
    %v798 = vunpack.c.l.b16 %v528
    %v799 = vunpack.c.l.b16 %v529
    %v800 = vunpack.c.h.b16 %v529
    %v801 = vunpack.c.l.b16 %v530
    %v802 = vunpack.c.l.b16 %v531
    %v803 = vunpack.c.h.b16 %v531
    %v804 = vunpack.c.l.b16 %v532
    %v805 = vunpack.c.l.b16 %v533
    %v806 = vunpack.c.h.b16 %v533
    %v807 = vunpack.c.l.b16 %v534
    %v808 = vpack.c.b16 %v667, %v664
    %v809 = vpack.c.b16 %v668, %v665
    %v810 = vpack.c.b16 %v669, %v666
    %v811 = vpack.c.b16 %v673, %v670
    %v812 = vpack.c.b16 %v674, %v671
    %v813 = vpack.c.b16 %v675, %v672
    %v814 = vpack.c.b16 %v679, %v676
    %v815 = vpack.c.b16 %v680, %v677
    %v816 = vpack.c.b16 %v681, %v678
    %v817 = vpack.c.b16 %v685, %v682
    %v818 = vpack.c.b16 %v686, %v683
    %v819 = vpack.c.b16 %v687, %v684
    %v820 = vpack.c.b16 %v691, %v688
    %v821 = vpack.c.b16 %v692, %v689
    %v822 = vpack.c.b16 %v693, %v690
    %v823 = vpack.c.b16 %v697, %v694
    %v824 = vpack.c.b16 %v698, %v695
    %v825 = vpack.c.b16 %v699, %v696
    %v826 = vpack.c.b16 %v703, %v700
    %v827 = vpack.c.b16 %v704, %v701
    %v828 = vpack.c.b16 %v705, %v702
    %v829 = vpack.c.b16 %v709, %v706
    %v830 = vpack.c.b16 %v710, %v707
    %v831 = vpack.c.b16 %v711, %v708
    %v832 = vpack.c.b16 %v715, %v712
    %v833 = vpack.c.b16 %v716, %v713
    %v834 = vpack.c.b16 %v717, %v714
    %v835 = vpack.c.b16 %v721, %v718
    %v836 = vpack.c.b16 %v722, %v719
    %v837 = vpack.c.b16 %v723, %v720
    %v838 = vpack.c.b16 %v727, %v724
    %v839 = vpack.c.b16 %v728, %v725
    %v840 = vpack.c.b16 %v729, %v726
    %v841 = vpack.c.b16 %v733, %v730
    %v842 = vpack.c.b16 %v734, %v731
    %v843 = vpack.c.b16 %v735, %v732
    %v844 = vpack.c.b16 %v739, %v736
    %v845 = vpack.c.b16 %v740, %v737
    %v846 = vpack.c.b16 %v741, %v738
    %v847 = vpack.c.b16 %v745, %v742
    %v848 = vpack.c.b16 %v746, %v743
    %v849 = vpack.c.b16 %v747, %v744
    %v850 = vpack.c.b16 %v751, %v748
    %v851 = vpack.c.b16 %v752, %v749
    %v852 = vpack.c.b16 %v753, %v750
    %v853 = vpack.c.b16 %v757, %v754
    %v854 = vpack.c.b16 %v758, %v755
    %v855 = vpack.c.b16 %v759, %v756
    %v856 = vpack.c.b16 %v763, %v760
    %v857 = vpack.c.b16 %v764, %v761
    %v858 = vpack.c.b16 %v765, %v762
    %v859 = vpack.c.b16 %v769, %v766
    %v860 = vpack.c.b16 %v770, %v767
    %v861 = vpack.c.b16 %v771, %v768
    %v862 = vpack.c.b16 %v775, %v772
    %v863 = vpack.c.b16 %v776, %v773
    %v864 = vpack.c.b16 %v777, %v774
    %v865 = vpack.c.b16 %v781, %v778
    %v866 = vpack.c.b16 %v782, %v779
    %v867 = vpack.c.b16 %v783, %v780
    %v868 = vpack.c.b16 %v787, %v784
    %v869 = vpack.c.b16 %v788, %v785
    %v870 = vpack.c.b16 %v789, %v786
    %v871 = vpack.c.b16 %v793, %v790
    %v872 = vpack.c.b16 %v794, %v791
    %v873 = vpack.c.b16 %v795, %v792
    %v874 = vpack.c.b16 %v799, %v796
    %v875 = vpack.c.b16 %v800, %v797
    %v876 = vpack.c.b16 %v801, %v798
    %v877 = vpack.c.b16 %v805, %v802
    %v878 = vpack.c.b16 %v806, %v803
    %v879 = vpack.c.b16 %v807, %v804
    %952 = vmatprep.subr.bf16.mxu0 %v830
    %953 = vmatpush1.bf16.msra.mxu0 %v829
    %954 = vmatprep.subr.bf16.mxu0 %v827
    %955 = vmatpush1.bf16.msra.mxu0 %v826
    %956 = vmatprep.subr.bf16.mxu0 %v824
    %957 = vmatpush1.bf16.msra.mxu0 %v823
    %958 = vmatprep.subr.bf16.mxu0 %v821
    %959 = vmatpush1.bf16.msra.mxu0 %v820
    %960 = vmatprep.subr.bf16.mxu0 %v818
    %961 = vmatpush1.bf16.msra.mxu0 %v817
    %962 = vmatprep.subr.bf16.mxu0 %v815
    %963 = vmatpush1.bf16.msra.mxu0 %v814
    %964 = vmatprep.subr.bf16.mxu0 %v812
    %965 = vmatpush1.bf16.msra.mxu0 %v811
    %966 = vmatprep.subr.bf16.mxu0 %v809
    %967 = vmatpush1.bf16.msra.mxu0 %v808
    %968 = vmatprep.subr.bf16.mxu0 %v854
    %969 = vmatpush2.bf16.msra.mxu0 %v853
    %970 = vmatprep.subr.bf16.mxu0 %v851
    %971 = vmatpush2.bf16.msra.mxu0 %v850
    %972 = vmatprep.subr.bf16.mxu0 %v848
    %973 = vmatpush2.bf16.msra.mxu0 %v847
    %974 = vmatprep.subr.bf16.mxu0 %v845
    %975 = vmatpush2.bf16.msra.mxu0 %v844
    %976 = vmatprep.subr.bf16.mxu0 %v842
    %977 = vmatpush2.bf16.msra.mxu0 %v841
    %978 = vmatprep.subr.bf16.mxu0 %v839
    %979 = vmatpush2.bf16.msra.mxu0 %v838
    %980 = vmatprep.subr.bf16.mxu0 %v836
    %981 = vmatpush2.bf16.msra.mxu0 %v835
    %982 = vmatprep.subr.bf16.mxu0 %v833
    %983 = vmatpush2.bf16.msra.mxu0 %v832
    %984 = vmatprep.mubr.bf16.mxu0 %v563
    %985 = vmatmul.mubr.bf16.gmra.mxu0 %v562
    %v986 = vpop.f32.mrf.mxu0
    %v987 = vadd.f32 %v540, %v986
    %v988 = vpop.f32.mrf.mxu0
    %v989 = vadd.f32 %v544, %v988
    %v990 = vpop.f32.mrf.mxu0
    %v991 = vadd.f32 %v540, %v990
    %v992 = vpop.f32.mrf.mxu0
    %v993 = vadd.f32 %v544, %v992
    %994 = vdwg.mxu0
    %995 = vmatprep.subr.bf16.mxu0 %v878
    %996 = vmatpush1.bf16.msra.mxu0 %v877
    %997 = vmatprep.subr.bf16.mxu0 %v875
    %998 = vmatpush1.bf16.msra.mxu0 %v874
    %999 = vmatprep.subr.bf16.mxu0 %v872
    %1000 = vmatpush1.bf16.msra.mxu0 %v871
    %1001 = vmatprep.subr.bf16.mxu0 %v869
    %1002 = vmatpush1.bf16.msra.mxu0 %v868
    %1003 = vmatprep.subr.bf16.mxu0 %v866
    %1004 = vmatpush1.bf16.msra.mxu0 %v865
    %1005 = vmatprep.subr.bf16.mxu0 %v863
    %1006 = vmatpush1.bf16.msra.mxu0 %v862
    %1007 = vmatprep.subr.bf16.mxu0 %v860
    %1008 = vmatpush1.bf16.msra.mxu0 %v859
    %1009 = vmatprep.subr.bf16.mxu0 %v857
    %1010 = vmatpush1.bf16.msra.mxu0 %v856
    %1011 = vmatprep.subr.bf16.mxu0 0
    %1012 = vmatpush2.bf16.msra.mxu0 0
    %1013 = vmatprep.subr.bf16.mxu0 0
    %1014 = vmatpush2.bf16.msra.mxu0 0
    %1015 = vmatprep.subr.bf16.mxu0 0
    %1016 = vmatpush2.bf16.msra.mxu0 0
    %1017 = vmatprep.subr.bf16.mxu0 0
    %1018 = vmatpush2.bf16.msra.mxu0 0
    %1019 = vmatprep.subr.bf16.mxu0 0
    %1020 = vmatpush2.bf16.msra.mxu0 0
    %1021 = vmatprep.subr.bf16.mxu0 0
    %1022 = vmatpush2.bf16.msra.mxu0 0
    %1023 = vmatprep.subr.bf16.mxu0 0
    %1024 = vmatpush2.bf16.msra.mxu0 0
    %1025 = vmatprep.subr.bf16.mxu0 0
    %1026 = vmatpush2.bf16.msra.mxu0 0
    %1027 = vmatprep.mubr.bf16.mxu0 0
    %1028 = vmatmul.mubr.bf16.gmra.mxu0 %v564
    %v1029 = vpop.f32.mrf.mxu0
    %v1030 = vadd.f32 %v987, %v1029
    %v1031 = vpop.f32.mrf.mxu0
    %v1032 = vadd.f32 %v989, %v1031
    %v1033 = vpop.f32.mrf.mxu0
    %v1034 = vadd.f32 %v991, %v1033
    %v1035 = vpop.f32.mrf.mxu0
    %v1036 = vadd.f32 %v993, %v1035
    %1037 = vdwg.mxu0
    %1038 = vmatprep.subr.bf16.mxu0 0
    %1039 = vmatpush1.bf16.msra.mxu0 %v831
    %1040 = vmatprep.subr.bf16.mxu0 0
    %1041 = vmatpush1.bf16.msra.mxu0 %v828
    %1042 = vmatprep.subr.bf16.mxu0 0
    %1043 = vmatpush1.bf16.msra.mxu0 %v825
    %1044 = vmatprep.subr.bf16.mxu0 0
    %1045 = vmatpush1.bf16.msra.mxu0 %v822
    %1046 = vmatprep.subr.bf16.mxu0 0
    %1047 = vmatpush1.bf16.msra.mxu0 %v819
    %1048 = vmatprep.subr.bf16.mxu0 0
    %1049 = vmatpush1.bf16.msra.mxu0 %v816
    %1050 = vmatprep.subr.bf16.mxu0 0
    %1051 = vmatpush1.bf16.msra.mxu0 %v813
    %1052 = vmatprep.subr.bf16.mxu0 0
    %1053 = vmatpush1.bf16.msra.mxu0 %v810
    %1054 = vmatprep.subr.bf16.mxu0 0
    %1055 = vmatpush2.bf16.msra.mxu0 %v855
    %1056 = vmatprep.subr.bf16.mxu0 0
    %1057 = vmatpush2.bf16.msra.mxu0 %v852
    %1058 = vmatprep.subr.bf16.mxu0 0
    %1059 = vmatpush2.bf16.msra.mxu0 %v849
    %1060 = vmatprep.subr.bf16.mxu0 0
    %1061 = vmatpush2.bf16.msra.mxu0 %v846
    %1062 = vmatprep.subr.bf16.mxu0 0
    %1063 = vmatpush2.bf16.msra.mxu0 %v843
    %1064 = vmatprep.subr.bf16.mxu0 0
    %1065 = vmatpush2.bf16.msra.mxu0 %v840
    %1066 = vmatprep.subr.bf16.mxu0 0
    %1067 = vmatpush2.bf16.msra.mxu0 %v837
    %1068 = vmatprep.subr.bf16.mxu0 0
    %1069 = vmatpush2.bf16.msra.mxu0 %v834
    %1070 = vmatprep.mubr.bf16.mxu0 %v563
    %1071 = vmatmul.mubr.bf16.gmra.mxu0 %v562
    %v1072 = vpop.f32.mrf.mxu0
    %v1073 = vadd.f32 %v548, %v1072
    %v1074 = vpop.f32.mrf.mxu0
    %v1075 = vpop.f32.mrf.mxu0
    %v1076 = vadd.f32 %v548, %v1075
    %v1077 = vpop.f32.mrf.mxu0
    %1078 = vdwg.mxu0
    %1079 = vmatprep.subr.bf16.mxu0 0
    %1080 = vmatpush1.bf16.msra.mxu0 %v879
    %1081 = vmatprep.subr.bf16.mxu0 0
    %1082 = vmatpush1.bf16.msra.mxu0 %v876
    %1083 = vmatprep.subr.bf16.mxu0 0
    %1084 = vmatpush1.bf16.msra.mxu0 %v873
    %1085 = vmatprep.subr.bf16.mxu0 0
    %1086 = vmatpush1.bf16.msra.mxu0 %v870
    %1087 = vmatprep.subr.bf16.mxu0 0
    %1088 = vmatpush1.bf16.msra.mxu0 %v867
    %1089 = vmatprep.subr.bf16.mxu0 0
    %1090 = vmatpush1.bf16.msra.mxu0 %v864
    %1091 = vmatprep.subr.bf16.mxu0 0
    %1092 = vmatpush1.bf16.msra.mxu0 %v861
    %1093 = vmatprep.subr.bf16.mxu0 0
    %1094 = vmatpush1.bf16.msra.mxu0 %v858
    %1095 = vmatprep.subr.bf16.mxu0 0
    %1096 = vmatpush2.bf16.msra.mxu0 0
    %1097 = vmatprep.subr.bf16.mxu0 0
    %1098 = vmatpush2.bf16.msra.mxu0 0
    %1099 = vmatprep.subr.bf16.mxu0 0
    %1100 = vmatpush2.bf16.msra.mxu0 0
    %1101 = vmatprep.subr.bf16.mxu0 0
    %1102 = vmatpush2.bf16.msra.mxu0 0
    %1103 = vmatprep.subr.bf16.mxu0 0
    %1104 = vmatpush2.bf16.msra.mxu0 0
    %1105 = vmatprep.subr.bf16.mxu0 0
    %1106 = vmatpush2.bf16.msra.mxu0 0
    %1107 = vmatprep.subr.bf16.mxu0 0
    %1108 = vmatpush2.bf16.msra.mxu0 0
    %1109 = vmatprep.subr.bf16.mxu0 0
    %1110 = vmatpush2.bf16.msra.mxu0 0
    %1111 = vmatprep.mubr.bf16.mxu0 0
    %1112 = vmatmul.mubr.bf16.gmra.mxu0 %v564
    %v1113 = vpop.f32.mrf.mxu0
    %v1114 = vadd.f32 %v1073, %v1113
    %v1115 = vpop.f32.mrf.mxu0
    %v1116 = vpop.f32.mrf.mxu0
    %v1117 = vadd.f32 %v1076, %v1116
    %v1118 = vpop.f32.mrf.mxu0
    %1119 = vdwg.mxu0
    %v1120 = vmax.f32 %v1030, 0.0
    %v1121 = vmax.f32 %v1032, 0.0
    %v1122 = vmax.f32 %v1114, 0.0
    %v1123 = vmax.f32 %v1034, 0.0
    %v1124 = vmax.f32 %v1036, 0.0
    %v1125 = vmax.f32 %v1117, 0.0
    %v1126 = vmul.f32 %v1120, %v103
    %v1127 = vmul.f32 %v1121, %v103
    %v1128 = vmul.f32 %v1122, %v103
    %v1129 = vmul.f32 %v1123, %v104
    %v1130 = vmul.f32 %v1124, %v104
    %v1131 = vmul.f32 %v1125, %v104
    %v1132 = vpack.c.bf16 %v1129, %v1126
    %v1133 = vpack.c.bf16 %v1130, %v1127
    %v1134 = vpack.c.bf16 %v1131, %v1128
    %v1138 = vunpack.c.l.b16 %v1132
    %v1139 = vunpack.c.l.b16 %v1133
    %v1140 = vunpack.c.l.b16 %v1134
    %v1141 = vunpack.c.h.b16 %v1132
    %v1142 = vunpack.c.h.b16 %v1133
    %v1143 = vunpack.c.h.b16 %v1134
    %v1144 = vpack.c.b16 %v1139, %v1138
    %v1145 = vpack.c.b16 %v1140, %v1140
    %v1146 = vpack.c.b16 %v1142, %v1141
    %v1147 = vpack.c.b16 %v1143, %v1143
    %1152 = vst [vmem:[#allocation11] sm:$0xff] %v1144
    %1153 = vst [vmem:[#allocation11 + $0x8] sm:$0xf] %v1145
    %1154 = vst [vmem:[#allocation11 + $0xc] sm:$0xff] %v1146
    %1155 = vst [vmem:[#allocation11 + $0x14] sm:$0xf] %v1147
    %v1156 = vld [vmem:[#allocation14] sm:$0x3f]
    %v1157 = vadd.f32 %v1126, %v1129
    %v1158 = vrot.slane %v1157, 4
    %v1159 = vadd.f32 %v1157, %v1158
    %v1160 = vrot.slane %v1159, 2
    %v1161 = vadd.f32 %v1159, %v1160
    %v1162 = vrot.slane %v1161, 1
    %v1163 = vadd.f32 %v1161, %v1162
    %v1164 = vadd.f32 %v1127, %v1130
    %v1165 = vrot.slane %v1164, 4
    %v1166 = vadd.f32 %v1164, %v1165
    %v1167 = vrot.slane %v1166, 2
    %v1168 = vadd.f32 %v1166, %v1167
    %v1169 = vrot.slane %v1168, 1
    %v1170 = vadd.f32 %v1168, %v1169
    %v1171 = vadd.f32 %v1128, %v1131
    %v1172 = vrot.slane %v1171, 4
    %v1173 = vadd.f32 %v1171, %v1172
    %v1174 = vrot.slane %v1173, 2
    %v1175 = vadd.f32 %v1173, %v1174
    %v1176 = vrot.slane %v1175, 1
    %v1177 = vadd.f32 %v1175, %v1176
    %v1178 = vmul.f32 %v1126, %v1126
    %v1179 = vmul.f32 %v1127, %v1127
    %v1180 = vmul.f32 %v1128, %v1128
    %v1181 = vmul.f32 %v1129, %v1129
    %v1182 = vmul.f32 %v1130, %v1130
    %v1183 = vmul.f32 %v1131, %v1131
    %v1184 = vadd.f32 %v1178, %v1181
    %v1185 = vrot.slane %v1184, 4
    %v1186 = vadd.f32 %v1184, %v1185
    %v1187 = vrot.slane %v1186, 2
    %v1188 = vadd.f32 %v1186, %v1187
    %v1189 = vrot.slane %v1188, 1
    %v1190 = vadd.f32 %v1188, %v1189
    %v1191 = vadd.f32 %v1179, %v1182
    %v1192 = vrot.slane %v1191, 4
    %v1193 = vadd.f32 %v1191, %v1192
    %v1194 = vrot.slane %v1193, 2
    %v1195 = vadd.f32 %v1193, %v1194
    %v1196 = vrot.slane %v1195, 1
    %v1197 = vadd.f32 %v1195, %v1196
    %v1198 = vadd.f32 %v1180, %v1183
    %v1199 = vrot.slane %v1198, 4
    %v1200 = vadd.f32 %v1198, %v1199
    %v1201 = vrot.slane %v1200, 2
    %v1202 = vadd.f32 %v1200, %v1201
    %v1203 = vrot.slane %v1202, 1
    %v1204 = vadd.f32 %v1202, %v1203
    %v1205 = vsel %vm419, %v1163, %v1190
    %v1206 = vsel %vm419, %v1170, %v1197
    %v1207 = vsel %vm419, %v1177, %v1204
    %v1211 = vcombine.low %v1205, %v1206
    %v1213 = vunpack.c.l.s4 1983009808
    %v1214 = vunpack.c.0.s8 %v1213
    %v1215 = vlaneseq
    %v1216 = vshrl.u32 %v1215, 7
    %v1217 = vsub.s32 %v1214, %v1216
    %v1218 = vrot.slane %v1211, %v1217
    %v1220 = vunpack.c.l.s4 1983009808
    %v1221 = vunpack.c.0.s8 %v1220
    %v1222 = vlaneseq
    %v1223 = vshrl.u32 %v1222, 7
    %v1224 = vsub.s32 %v1221, %v1223
    %v1225 = vrot.slane %v1207, %v1224
    %v1226 = vcombine.low %v1218, %v1225
    %v1228 = vadd.f32 %v1156, %v1226
    %1229 = vst [vmem:[#allocation14] sm:$0x3f] %v1228
    // Predicated region
    $region46: #{tpu_custom_call.1} parent=1 // pred_check
      _
    $region47: #{tpu_custom_call.1} parent=1 // pred_check_branch
      %1231 = sbr.rel (0) target = $region49
    $region48: #{tpu_custom_call.1} parent=1 // pred_region
      %s1233 = ssub.s32 256, 256
      %1234 = vsyncadd [#allocation4], %s1233
      %s1235 = sshll.u32 [#allocation10], 4
      %s1236 = int_to_ptr.vmem [resolvable:$true] %s1235
      %1241 = dma.vmem_to_hbm [thread:$0]  %s1236, 256, %s6, [#allocation4], 128, 128, 8
    $region49: #{tpu_custom_call.1} parent=1 // pred_fallthru
      _
    // Predicated region
    $region50: #{tpu_custom_call.1} parent=1 // pred_check
      _
    $region51: #{tpu_custom_call.1} parent=1 // pred_check_branch
      %1243 = sbr.rel (0) target = $region53
    $region52: #{tpu_custom_call.1} parent=1 // pred_region
      %s1245 = ssub.s32 384, 384
      %1246 = vsyncadd [#allocation12], %s1245
      %s1247 = sshll.u32 [#allocation11], 4
      %s1248 = int_to_ptr.vmem [resolvable:$true] %s1247
      %1253 = dma.vmem_to_hbm [thread:$0]  %s1248, 384, %s7, [#allocation12], 192, 192, 12
    $region53: #{tpu_custom_call.1} parent=1 // pred_fallthru
      _
    // Predicated region
    $region54: #{tpu_custom_call.1} parent=1 // pred_check
      _
    $region55: #{tpu_custom_call.1} parent=1 // pred_check_branch
      %1255 = sbr.rel (0) target = $region57
    $region56: #{tpu_custom_call.1} parent=1 // pred_region
      %s1257 = ssub.s32 64, 64
      %1258 = vsyncadd [#allocation12], %s1257
      %s1260 = sshll.u32 [#allocation13], 4
      %s1261 = int_to_ptr.vmem [resolvable:$true] %s1260
      %1263 = dma.vmem_to_hbm [thread:$0]  %s1261, 64, %s8, [#allocation12]
    $region57: #{tpu_custom_call.1} parent=1 // pred_fallthru
      _
    // Predicated region
    $region58: #{tpu_custom_call.1} parent=1 // pred_check
      _
    $region59: #{tpu_custom_call.1} parent=1 // pred_check_branch
      %1265 = sbr.rel (0) target = $region61
    $region60: #{tpu_custom_call.1} parent=1 // pred_region
      %s1267 = ssub.s32 96, 96
      %1268 = vsyncadd [#allocation15], %s1267
      %s1270 = sshll.u32 [#allocation14], 4
      %s1271 = int_to_ptr.vmem [resolvable:$true] %s1270
      %1273 = dma.vmem_to_hbm [thread:$0]  %s1271, 96, %s9, [#allocation15]
    $region61: #{tpu_custom_call.1} parent=1 // pred_fallthru
      _
    // Predicated region
    $region62: #{tpu_custom_call.1} parent=1 // pred_check
      _
    $region63: #{tpu_custom_call.1} parent=1 // pred_check_branch
      %1275 = sbr.rel (0) target = $region65
    $region64: #{tpu_custom_call.1} parent=1 // pred_region
      %1276 = dma.done [#allocation4], 256
    $region65: #{tpu_custom_call.1} parent=1 // pred_fallthru
      _
    // Predicated region
    $region66: #{tpu_custom_call.1} parent=1 // pred_check
      _
    $region67: #{tpu_custom_call.1} parent=1 // pred_check_branch
      %1278 = sbr.rel (0) target = $region69
    $region68: #{tpu_custom_call.1} parent=1 // pred_region
      %1279 = dma.done [#allocation12], 384
    $region69: #{tpu_custom_call.1} parent=1 // pred_fallthru
      _
    // Predicated region
    $region70: #{tpu_custom_call.1} parent=1 // pred_check
      _
    $region71: #{tpu_custom_call.1} parent=1 // pred_check_branch
      %1281 = sbr.rel (0) target = $region73
    $region72: #{tpu_custom_call.1} parent=1 // pred_region
      %1282 = dma.done [#allocation12], 64
    $region73: #{tpu_custom_call.1} parent=1 // pred_fallthru
      _
    // Predicated region
    $region74: #{tpu_custom_call.1} parent=1 // pred_check
      _
    $region75: #{tpu_custom_call.1} parent=1 // pred_check_branch
      %1284 = sbr.rel (0) target = $region77
    $region76: #{tpu_custom_call.1} parent=1 // pred_region
      %1285 = dma.done [#allocation15], 96
    $region77: #{tpu_custom_call.1} parent=1 // pred_fallthru
      _
    %1286 = vsyncpa [#allocation3], 1
    %1287 = vsyncpa [#allocation6], 1
    %1288 = vsyncpa [#allocation9], 1
    %1289 = vsyncpa [#allocation4], 1
    %1290 = vsyncpa [#allocation12], 1
    %1291 = vsyncpa [#allocation15], 1

</llo_original>
